<compile_context>
chip_gen: v6e
topology: v6e:2x2x1
jax: 0.10.0
libtpu: 0.0.40
codegen_flags: <defaults>
</compile_context>

<pallas_src>
import functools

import jax
import jax.numpy as jnp
from jax import lax
from jax.experimental import pallas as pl
from jax.experimental.pallas import tpu as pltpu

_TARGET_BLOCK_BYTES = 4 * 1024 * 1024        # ~4 MiB blocks (double-buffered in+out = 16 MiB)
_MIN_BLOCK_BYTES = 256 * 1024                # don't shrink blocks below ~256 KiB
_TARGET_ROW_BLOCKS = 8                       # aim for >=8 steps on the leading parallel axis
_MAX_LANE_ELEMS = 8192                       # cap on the lane (last-dim) width we search
_VMEM_LIMIT_BYTES = 48 * 1024 * 1024         # headroom under v7x's 64 MiB per-TC VMEM
_DEFAULT_MIN_PALLAS_BYTES = 1024 * 1024      # below this, plain XLA fusion wins


# ---------------------------------------------------------------------------
# Kernel
# ---------------------------------------------------------------------------
def _sparsify_block_kernel(thr_ref, x_ref, o_ref, *, lane_width, b_strad, off_in_strad):
    """One (1, tile_r, C) block of the flattened (B_eff, R, C) view.

    Static params (trace-time Python ints):
      lane_width   = C (flat-index stride per sublane row)
      b_strad      = row-block index (grid axis 0) whose block contains the apply start
      off_in_strad = flat offset of the apply start inside that block (0 => aligned)

    Blocks with pid <  b_strad : untouched prefix -> identity copy.
    Block  with pid == b_strad : masked by flat index if off_in_strad > 0.
    Blocks with pid >= first   : plain sparsify.
    """
    pid = pl.program_id(0)
    x = x_ref[...]                                    # (1, tile_r, C)
    thr = thr_ref[0].astype(x.dtype)                  # compare/select in x's dtype
    sp = (jnp.abs(x) > thr).astype(x.dtype) * x       # 0*NaN = NaN, strict '>' (torch match)

    first_full = b_strad + (1 if off_in_strad > 0 else 0)

    if first_full == 0:                               # everything visited is apply region
        o_ref[...] = sp
        return

    @pl.when(pid >= first_full)
    def _():
        o_ref[...] = sp

    if b_strad > 0:
        @pl.when(pid < b_strad)
        def _():
            o_ref[...] = x                            # prefix pass-through copy

    if off_in_strad > 0:
        @pl.when(pid == b_strad)
        def _():
            row = lax.broadcasted_iota(jnp.int32, x.shape, 1)
            col = lax.broadcasted_iota(jnp.int32, x.shape, 2)
            flat = row * lane_width + col             # within-block flat index
            o_ref[...] = jnp.where(flat >= off_in_strad, sp, x)


# ---------------------------------------------------------------------------
# Static tiling helpers (trace-time Python only)
# ---------------------------------------------------------------------------
def _sublane_pack(itemsize):
    return {4: 8, 2: 16, 1: 32}.get(itemsize, 8)


def _round_up(v, m):
    return -(-v // m) * m


def _choose_lane_width(n_flat, start_c, min_rows):
    """Pick C: a 128-multiple divisor of n_flat (lane-dense last dim), preferring
    C that keeps the apply start row-aligned and leaves enough sublane rows."""
    cands = [c for c in range(128, min(n_flat, _MAX_LANE_ELEMS) + 1, 128)
             if n_flat % c == 0]
    if not cands:
        return None
    preds = (lambda c: start_c % c == 0 and n_flat // c >= min_rows,
             lambda c: n_flat // c >= min_rows,
             lambda c: start_c % c == 0,
             lambda c: True)
    for pred in preds:
        ok = [c for c in cands if pred(c)]
        if ok:
            return max(ok)
    return None


def _pick_tile_rows(rows_visit, row_bytes, pack):
    """Row tile (multiple of the dtype sublane pack): ~_TARGET_BLOCK_BYTES blocks,
    >= _MIN_BLOCK_BYTES, and roughly _TARGET_ROW_BLOCKS blocks along the leading axis."""
    cap = max(pack, (_TARGET_BLOCK_BYTES // max(row_bytes, 1)) // pack * pack)
    floor = min(cap, max(pack, _round_up(max(_MIN_BLOCK_BYTES // max(row_bytes, 1), 1), pack)))
    want = _round_up(max(1, rows_visit // _TARGET_ROW_BLOCKS), pack)
    tile = max(floor, min(cap, want))
    tile = min(tile, _round_up(max(rows_visit, 1), pack))
    return max(pack, tile)


# ---------------------------------------------------------------------------
# Plain-XLA paths (tiny workloads / shapes with no lane-dense fold)
# ---------------------------------------------------------------------------
def _sparsify_xla(x, threshold, start):
    thr = jnp.asarray(threshold, jnp.float32).astype(x.dtype)
    sp = (jnp.abs(x) > thr).astype(x.dtype) * x
    if start == 0:
        return sp
    seq = lax.broadcasted_iota(jnp.int32, (1, x.shape[1], 1), 1)
    return jnp.where(seq >= start, sp, x)


# ---------------------------------------------------------------------------
# Wrapper (reproduces SparsifyFn.forward)
# ---------------------------------------------------------------------------
def sparsify_fn(x, threshold, apply_prefill=True, donate_x=False,
                min_pallas_bytes=_DEFAULT_MIN_PALLAS_BYTES):
    """JAX/Pallas equivalent of SparsifyFn.forward for x of shape (B, S, H).

    donate_x: set True only if the caller donates x; enables the alias path that
    skips the untouched prefix entirely. With donate_x=False the prefix is
    identity-copied in-kernel (one read + one write of every byte, no hidden copy).
    """
    B, S, H = x.shape

    if S > 1 and not apply_prefill:
        return x                                       # identity branch

    if S > 1:                                          # prefill: last S//2 positions
        apply_len = S // 2
        start = S - apply_len
    else:                                              # decode (S == 1)
        apply_len, start = 1, 0

    dtype = x.dtype
    itemsize = dtype.itemsize
    pack = _sublane_pack(itemsize)

    apply_bytes = B * apply_len * H * itemsize
    if apply_bytes < min_pallas_bytes:
        return _sparsify_xla(x, threshold, start)      # tiny: launch overhead dominates

    # Flattened per-batch view.  Decode (start == 0) has no per-batch prefix, so the
    # batch dim is folded into the rows as well for maximal sublane packing.
    if start == 0:
        b_eff, n_flat = 1, B * S * H
    else:
        b_eff, n_flat = B, S * H
    start_c = start * H

    lane_c = _choose_lane_width(n_flat, start_c, min_rows=pack * _TARGET_ROW_BLOCKS)
    if lane_c is None:
        # TODO(synk): no lane-dense 128-fold exists for this (rare) shape; XLA's fused
        # elementwise op is already HBM-bound here, so skip the custom kernel.
        return _sparsify_xla(x, threshold, start)

    n_rows = n_flat // lane_c
    row_bytes = lane_c * itemsize
    start_row = start_c // lane_c

    use_alias = bool(donate_x) and start_c > 0
    if use_alias:
        # Visit only the apply region; unvisited prefix blocks keep the donated
        # input's bytes via input_output_aliases.
        tile_r = min(_pick_tile_rows(n_rows - start_row, row_bytes, pack), n_rows)
        r0 = (start_row // tile_r) * tile_r
    else:
        # Visit everything; prefix blocks are identity-copied by the kernel.
        tile_r = min(_pick_tile_rows(n_rows, row_bytes, pack), n_rows)
        r0 = 0

    rows_visit = n_rows - r0
    n_r = -(-rows_visit // tile_r)                     # cdiv
    blk0 = r0 // tile_r

    block_flat = tile_r * lane_c
    rel = start_c - r0 * lane_c                        # apply start relative to 1st visited block
    b_strad = rel // block_flat
    off_in_strad = rel - b_strad * block_flat

    thr = jnp.asarray(threshold, jnp.float32).reshape(1)
    x3 = x.reshape(b_eff, n_rows, lane_c)

    kernel = functools.partial(_sparsify_block_kernel, lane_width=lane_c,
                               b_strad=b_strad, off_in_strad=off_in_strad)

    out3 = pl.pallas_call(
        kernel,
        out_shape=jax.ShapeDtypeStruct((b_eff, n_rows, lane_c), dtype),
        grid=(n_r, b_eff),                             # big row-block axis first (megacore)
        in_specs=[
            pl.BlockSpec(memory_space=pltpu.SMEM),                        # threshold scalar
            pl.BlockSpec((1, tile_r, lane_c), lambda r, b: (b, blk0 + r, 0)),
        ],
        out_specs=pl.BlockSpec((1, tile_r, lane_c), lambda r, b: (b, blk0 + r, 0)),
        input_output_aliases=({1: 0} if use_alias else {}),
        compiler_params=pltpu.CompilerParams(
            dimension_semantics=("parallel", "parallel"),
            vmem_limit_bytes=_VMEM_LIMIT_BYTES),
    )(thr, x3)
    return out3.reshape(B, S, H)


# ---------------------------------------------------------------------------
# Pure-JAX reference (mirrors the PyTorch module)
# ---------------------------------------------------------------------------
def _reference(x, threshold, apply_prefill=True):
    thr = jnp.asarray(threshold, jnp.float32).astype(x.dtype)

    def apply_(t):
        return (jnp.abs(t) > thr).astype(t.dtype) * t

    B, S, H = x.shape
    if S > 1 and apply_prefill:
        half = S // 2
        return jnp.concatenate([x[:, :-half, :], apply_(x[:, -half:, :])], axis=1)
    if S > 1:
        return x
    return apply_(x)


if __name__ == "__main__":
    threshold = 0.1
    key = jax.random.PRNGKey(0)
    ks = jax.random.split(key, 9)

    fn = jax.jit(sparsify_fn, static_argnums=(2, 3, 4))

    def check(name, x, apply_prefill=True, donate=False, min_bytes=0):
        out = jax.block_until_ready(fn(x, threshold, apply_prefill, donate, min_bytes))
        ref = _reference(x, threshold, apply_prefill)
        assert out.shape == x.shape and out.dtype == x.dtype, name
        assert jnp.allclose(out.astype(jnp.float32), ref.astype(jnp.float32)), name

    # 1) Prefill f32, H < 128: seq*hidden folds onto 128 lanes; straddling block masked.
    check("prefill_f32_small_h", jax.random.normal(ks[0], (2, 8, 32), jnp.float32))

    # 2) Prefill bf16, H = 128: dtype-aware (16-row) sublane packing path.
    check("prefill_bf16", jax.random.normal(ks[1], (2, 8, 128), jnp.bfloat16))

    # 3) Prefill f32 with donated input: prefix block skipped via input_output_aliases.
    check("prefill_donated", jax.random.normal(ks[2], (1, 64, 128), jnp.float32), donate=True)

    # 4) Prefill f32, masked straddle block covering the whole per-batch slab.
    check("prefill_straddle", jax.random.normal(ks[3], (2, 64, 128), jnp.float32))

    # 5) Prefill f32, multi-block grid: exercises identity-copy prefix blocks (b_strad > 0).
    check("prefill_multiblock", jax.random.normal(ks[4], (1, 1024, 256), jnp.float32))

    # 6) Decode (S == 1): whole tensor sparsified; batch folded into the sublane rows.
    check("decode", jax.random.normal(ks[5], (4, 1, 128), jnp.float32))

    # 7) Odd seq length / no 128-fold: falls back to the fused XLA path.
    check("odd_seq_xla", jax.random.normal(ks[6], (2, 7, 32), jnp.float32))

    # 8) Tiny-workload bypass at the default threshold (pure XLA, no pallas_call).
    check("tiny_bypass", jax.random.normal(ks[7], (2, 8, 32), jnp.float32),
          min_bytes=_DEFAULT_MIN_PALLAS_BYTES)

    # 9) apply_prefill=False with S > 1 is an identity (no kernel launched).
    x_id = jax.random.normal(ks[8], (2, 8, 32), jnp.float32)
    out_id = jax.block_until_ready(fn(x_id, threshold, False, False, 0))
    assert jnp.array_equal(out_id, x_id)

    print("KERNEL_OK")
</pallas_src>

<mosaic_0001>
module attributes {stable_mosaic.version = 11 : i64} {
  func.func @_sparsify_block_kernel(%arg0: i32, %arg1: i32, %arg2: memref<1xf32, #tpu.memory_space<smem>>, %arg3: memref<1x2x128xf32, #tpu.memory_space<vmem>>, %arg4: memref<1x2x128xf32, #tpu.memory_space<vmem>>) attributes {dimension_semantics = [#tpu.dimension_semantics<parallel>, #tpu.dimension_semantics<parallel>], iteration_bounds = array<i64: 1, 2>, scalar_prefetch = 0 : i64, scratch_operands = 0 : i64, tpu.core_type = #tpu.core_type<tc>, window_params = [{transform_indices = @transform_0, window_bounds = array<i64: 1>}, {transform_indices = @transform_1, window_bounds = array<i64: 1, 2, 128>}, {transform_indices = @transform_2, window_bounds = array<i64: 1, 2, 128>}]} {
    %c0 = arith.constant 0 : index
    %c0_0 = arith.constant 0 : index
    %c0_1 = arith.constant 0 : index
    %0 = vector.load %arg3[%c0, %c0_0, %c0_1] : memref<1x2x128xf32, #tpu.memory_space<vmem>>, vector<1x2x128xf32>
    %c0_2 = arith.constant 0 : index
    %1 = memref.load %arg2[%c0_2] : memref<1xf32, #tpu.memory_space<smem>>
    %2 = math.absf %0 : vector<1x2x128xf32>
    %3 = vector.broadcast %1 : f32 to vector<1x2x128xf32>
    %4 = arith.cmpf ogt, %2, %3 : vector<1x2x128xf32>
    %5 = arith.extui %4 : vector<1x2x128xi1> to vector<1x2x128xi32>
    %6 = arith.sitofp %5 : vector<1x2x128xi32> to vector<1x2x128xf32>
    %7 = arith.mulf %6, %0 : vector<1x2x128xf32>
    %c1_i32 = arith.constant 1 : i32
    %8 = arith.cmpi sge, %arg0, %c1_i32 : i32
    %9 = arith.extui %8 : i1 to i32
    %c0_i32 = arith.constant 0 : i32
    %10 = arith.cmpi ne, %9, %c0_i32 : i32
    scf.if %10 {
      %c0_5 = arith.constant 0 : index
      %c0_6 = arith.constant 0 : index
      %c0_7 = arith.constant 0 : index
      %14 = vector.load %arg4[%c0_5, %c0_6, %c0_7] : memref<1x2x128xf32, #tpu.memory_space<vmem>>, vector<1x2x128xf32>
      tpu.vector_store %arg4[%c0_5, %c0_6, %c0_7], %7 {strides = array<i32>} : memref<1x2x128xf32, #tpu.memory_space<vmem>>, vector<1x2x128xf32>,
    } else {
    }
    %c0_i32_3 = arith.constant 0 : i32
    %11 = arith.cmpi eq, %arg0, %c0_i32_3 : i32
    %12 = arith.extui %11 : i1 to i32
    %c0_i32_4 = arith.constant 0 : i32
    %13 = arith.cmpi ne, %12, %c0_i32_4 : i32
    scf.if %13 {
      %14 = tpu.iota {dimensions = array<i32: 1>} : vector<1x2x128xi32>
      %15 = tpu.iota {dimensions = array<i32: 2>} : vector<1x2x128xi32>
      %c128_i32 = arith.constant 128 : i32
      %16 = vector.broadcast %c128_i32 : i32 to vector<1x2x128xi32>
      %17 = arith.muli %14, %16 : vector<1x2x128xi32>
      %18 = arith.addi %17, %15 : vector<1x2x128xi32>
      %c128_i32_5 = arith.constant 128 : i32
      %19 = vector.broadcast %c128_i32_5 : i32 to vector<1x2x128xi32>
      %20 = arith.cmpi sge, %18, %19 : vector<1x2x128xi32>
      %21 = arith.select %20, %7, %0 : vector<1x2x128xi1>, vector<1x2x128xf32>
      %c0_6 = arith.constant 0 : index
      %c0_7 = arith.constant 0 : index
      %c0_8 = arith.constant 0 : index
      %22 = vector.load %arg4[%c0_6, %c0_7, %c0_8] : memref<1x2x128xf32, #tpu.memory_space<vmem>>, vector<1x2x128xf32>
      tpu.vector_store %arg4[%c0_6, %c0_7, %c0_8], %21 {strides = array<i32>} : memref<1x2x128xf32, #tpu.memory_space<vmem>>, vector<1x2x128xf32>,
    } else {
    }
    return
  }
  func.func @transform_0(%arg0: i32, %arg1: i32) -> i32 {
    %c0_i32 = arith.constant 0 : i32
    %c0_i32_0 = arith.constant 0 : i32
    return %c0_i32 : i32
  }
  func.func @transform_1(%arg0: i32, %arg1: i32) -> (i32, i32, i32) {
    %c0_i32 = arith.constant 0 : i32
    %0 = arith.addi %c0_i32, %arg0 : i32
    %c0_i32_0 = arith.constant 0 : i32
    %c0_i32_1 = arith.constant 0 : i32
    return %arg1, %0, %c0_i32_0 : i32, i32, i32
  }
  func.func @transform_2(%arg0: i32, %arg1: i32) -> (i32, i32, i32) {
    %c0_i32 = arith.constant 0 : i32
    %0 = arith.addi %c0_i32, %arg0 : i32
    %c0_i32_0 = arith.constant 0 : i32
    %c0_i32_1 = arith.constant 0 : i32
    return %arg1, %0, %c0_i32_0 : i32, i32, i32
  }
}

</mosaic_0001>

<llo_original>
// kernel: sparsify_fn.1
$region0: #{sparsify_fn.1}
  #allocation0 [shape = 'u32[]', space=smem, size = 0x4, offset = 0x4, fixed_abs, tag = 'smem constant byte address 0x4 - core index']
  #allocation1 [shape = 'u32[144,128]{1,0:T(1,128)}', space=vmem, size = 0x12000, scoped, tag = 'internal scratch']
  #allocation2 [shape = 'f32[1]{0:T(128)S(6)}', space=smem, size = 0x200, scoped, tag = 'scoped memory for sparsify_fn.1']
  %s0 = inlined_call_operand.<no memory space> [shape: f32[1], index: 0, kind: input, shape index: {}]
  %s1 = inlined_call_operand.vmem [shape: f32[2,2,128], index: 1, kind: input, shape index: {}]
  %s2 = inlined_call_operand.vmem [shape: f32[2,2,128], index: 2, kind: output, shape index: {}]
  %s3 = sld [smem:[#allocation0]]
  $region49: #{sparsify_fn.1} parent=0
    _
  %s5 = ssub.s32 1, %s3
  %s6 = scalar_select 0, %s5, %s3
  %7 = sst [smem:[#allocation2]] %s0
  loop: start=0, step=1, limit=4
  $region2: #{sparsify_fn.1} parent=0 // loop_pre_header
    _
  $region3: #{sparsify_fn.1} parent=0 // loop_header
    %s9 = sphi 0, %s13
    %p10 = scmp.ge.s32.totalorder %s9, 4
    %s16 = sphi 0, %s28
    %s17 = sphi 0, %s24
    %s18 = sphi 0, %s16
    %s19 = sphi 0, %s17
    %s20 = sphi 0, %s18
    %s21 = sphi 0, %s19
    %s29 = sphi 0, %s29
    %s31 = sphi 0, %s29
    %s32 = sphi 0, %s31
    %s46 = sphi 0, %s32
    %s54 = sphi 0, %s56
    %s57 = sphi 0, %s54
    %s58 = sphi 0, %s57
    %s74 = sphi 0, %s58
    %s82 = sphi 0, %s84
    %s85 = sphi 0, %s82
    %s86 = sphi 0, %s85
    %s102 = sphi 0, %s86
  $region4: #{sparsify_fn.1} parent=0 // loop_header_branch
    %12 = sbr.rel (%p10) target = $region8
  $region5: #{sparsify_fn.1} parent=0 // loop_body
    %s14 = ssub.s32 %s9, 1
    %s15 = ssub.s32 %s9, 2
    %s22 = sadd.s32 1, %s17
    %p23 = scmp.ge.s32.totalorder %s22, 2
    %s24 = scalar_select %p23, 0, %s22
    %s25 = sadd.s32 1, %s16
    %s26 = scalar_select %p23, %s25, %s16
    %p27 = scmp.ge.s32.totalorder %s26, 1
    %s28 = scalar_select %p27, 0, %s26
    %s30 = sadd.s32 %s29, 1
    %p33 = scmp.eq.s32.totalorder %s9, 1
    %p34 = scmp.ne.s32.totalorder %s29, %s31
    %p35 = scmp.eq.s32.totalorder %s9, 0
    %p36 = por %p34, %p35
    %p37 = scmp.ne.s32.totalorder %s29, %s31
    %p38 = scmp.eq.s32.totalorder %s14, 1
    %p39 = por %p37, %p38
    %p40 = scmp.ne.s32.totalorder %s31, %s32
    %p41 = scmp.eq.s32.totalorder %s14, 0
    %p42 = por %p40, %p41
    %p43 = scmp.ne.s32.totalorder %s31, %s32
    %p44 = scmp.eq.s32.totalorder %s15, 1
    %p45 = por %p43, %p44
    %p47 = scmp.ne.s32.totalorder %s32, %s46
    %p48 = scmp.eq.s32.totalorder %s15, 0
    %p49 = por %p47, %p48
    %s50 = ssub.s32 %s17, %s24
    %s51 = ssub.s32 %s16, %s28
    %s52 = sor.u32 %s50, %s51
    %p53 = scmp.eq.s32.totalorder %s52, 0
    %s55 = sadd.s32 %s54, 1
    %s56 = scalar_select %p53, %s54, %s55
    %p59 = pneg %p53
    %p60 = scmp.eq.s32.totalorder %s9, 1
    %p61 = por %p59, %p60
    %p62 = scmp.ne.s32.totalorder %s54, %s57
    %p63 = scmp.eq.s32.totalorder %s9, 0
    %p64 = por %p62, %p63
    %p65 = scmp.ne.s32.totalorder %s54, %s57
    %p66 = scmp.eq.s32.totalorder %s14, 1
    %p67 = por %p65, %p66
    %p68 = scmp.ne.s32.totalorder %s57, %s58
    %p69 = scmp.eq.s32.totalorder %s14, 0
    %p70 = por %p68, %p69
    %p71 = scmp.ne.s32.totalorder %s57, %s58
    %p72 = scmp.eq.s32.totalorder %s15, 1
    %p73 = por %p71, %p72
    %p75 = scmp.ne.s32.totalorder %s58, %s74
    %p76 = scmp.eq.s32.totalorder %s15, 0
    %p77 = por %p75, %p76
    %s78 = ssub.s32 %s17, %s24
    %s79 = ssub.s32 %s16, %s28
    %s80 = sor.u32 %s78, %s79
    %p81 = scmp.eq.s32.totalorder %s80, 0
    %s83 = sadd.s32 %s82, 1
    %s84 = scalar_select %p81, %s82, %s83
    %p87 = pneg %p81
    %p88 = scmp.eq.s32.totalorder %s9, 1
    %p89 = por %p87, %p88
    %p90 = scmp.ne.s32.totalorder %s82, %s85
    %p91 = scmp.eq.s32.totalorder %s9, 0
    %p92 = por %p90, %p91
    %p93 = scmp.ne.s32.totalorder %s82, %s85
    %p94 = scmp.eq.s32.totalorder %s14, 1
    %p95 = por %p93, %p94
    %p96 = scmp.ne.s32.totalorder %s85, %s86
    %p97 = scmp.eq.s32.totalorder %s14, 0
    %p98 = por %p96, %p97
    %p99 = scmp.ne.s32.totalorder %s85, %s86
    %p100 = scmp.eq.s32.totalorder %s15, 1
    %p101 = por %p99, %p100
    %p103 = scmp.ne.s32.totalorder %s86, %s102
    %p104 = scmp.eq.s32.totalorder %s15, 0
    %p105 = por %p103, %p104
    %p106 = scmp.le.s32.totalorder 1, %s9
    %p107 = scmp.lt.s32.totalorder %s9, 3
    %p108 = pnand %p106, %p107
    %p109 = pneg %p108
    // Predicated region
    $region9: #{sparsify_fn.1} parent=5 // pred_check
      _
    $region10: #{sparsify_fn.1} parent=5 // pred_check_branch
      %111 = sbr.rel (%p108) target = $region12
    $region11: #{sparsify_fn.1} parent=5 // pred_region
      %s112 = ssub.s32 %s9, 1
      // Predicated region
      $region13: #{sparsify_fn.1} parent=11 // pred_check
        %p113 = pneg %p42
      $region14: #{sparsify_fn.1} parent=11 // pred_check_branch
        %115 = sbr.rel (%p113) target = $region16
      $region15: #{sparsify_fn.1} parent=11 // pred_region
        _
      $region16: #{sparsify_fn.1} parent=11 // pred_fallthru
        _
    $region12: #{sparsify_fn.1} parent=5 // pred_fallthru
      _
    %p116 = scmp.lt.s32.totalorder %s9, 2
    // Predicated region
    $region17: #{sparsify_fn.1} parent=5 // pred_check
      %p117 = pneg %p116
    $region18: #{sparsify_fn.1} parent=5 // pred_check_branch
      %119 = sbr.rel (%p117) target = $region20
    $region19: #{sparsify_fn.1} parent=5 // pred_region
      // Predicated region
      $region21: #{sparsify_fn.1} parent=19 // pred_check
        %p120 = pneg %p64
      $region22: #{sparsify_fn.1} parent=19 // pred_check_branch
        %122 = sbr.rel (%p120) target = $region24
      $region23: #{sparsify_fn.1} parent=19 // pred_region
        %p123 = scmp.lt.s32.totalorder %s17, 1
        %s124 = scalar_select %p123, %s17, 1
        %p125 = scmp.lt.s32.totalorder %s16, 0
        %s126 = scalar_select %p125, %s16, 0
        %s127 = sadd.s32 %s126, %s124
        %s128 = smul.addr %s127, 2
        %s129 = scalar_lea.vmem %s1, %s128
      $region24: #{sparsify_fn.1} parent=19 // pred_fallthru
        _
    $region20: #{sparsify_fn.1} parent=5 // pred_fallthru
      _
    %p130 = scmp.le.s32.totalorder 1, %s9
    %p131 = scmp.lt.s32.totalorder %s9, 3
    %p132 = pnand %p130, %p131
    %p133 = pneg %p132
    // Predicated region
    $region25: #{sparsify_fn.1} parent=5 // pred_check
      _
    $region26: #{sparsify_fn.1} parent=5 // pred_check_branch
      %135 = sbr.rel (%p132) target = $region28
    $region27: #{sparsify_fn.1} parent=5 // pred_region
      %s136 = ssub.s32 %s9, 1
      %p137 = pneg %p42
      %p138 = pneg %p39
      %p139 = scmp.lt.s32.totalorder %s19, 1
      %s140 = scalar_select %p139, %s19, 1
      %p141 = scmp.lt.s32.totalorder %s18, 0
      %s142 = scalar_select %p141, %s18, 0
      %s143 = sadd.s32 %s142, %s140
      %s144 = smul.addr %s143, 2
      %s145 = scalar_lea.vmem %s1, %s144
      %p146 = pneg %p70
      %p147 = pneg %p67
      %p148 = pneg %p98
      %p149 = pneg %p95
      %p150 = scmp.lt.s32.totalorder %s19, 1
      %s151 = scalar_select %p150, %s19, 1
      %p152 = scmp.lt.s32.totalorder %s18, 0
      %s153 = scalar_select %p152, %s18, 0
      %s154 = sadd.s32 %s153, %s151
      %s155 = smul.addr %s154, 2
      %s156 = scalar_lea.vmem %s2, %s155
      %p157 = scmp.lt.s32.totalorder %s19, 1
      %s158 = scalar_select %p157, %s19, 1
      %p159 = scmp.lt.s32.totalorder %s18, 0
      %s160 = scalar_select %p159, %s18, 0
      %s161 = sadd.s32 %s160, %s158
      %s162 = smul.addr %s161, 2
      %s163 = scalar_lea.vmem %s1, %s162
      %p164 = scmp.lt.s32.totalorder %s19, 1
      %s165 = scalar_select %p164, %s19, 1
      %p166 = scmp.lt.s32.totalorder %s18, 0
      %s167 = scalar_select %p166, %s18, 0
      %s168 = sadd.s32 %s167, %s165
      %s169 = smul.addr %s168, 2
      %s170 = scalar_lea.vmem %s2, %s169
      %v171 = vld [vmem:[%s163] sm:$0x3]
      %s172 = sld [smem:[#allocation2]]
      %v173 = vand.u32 2147483647, %v171
      %v174 = vstv %s172
      %vm175 = vcmp.gt.f32.partialorder %v173, %v174
      %v176 = vsel %vm175, 1, 0
      %v177 = vcvt.s32.f32 %v176
      %v178 = vmul.f32 %v177, %v171
      %p179 = scmp.ge.s32.totalorder %s18, 1
      // Predicated region
      $region29: #{sparsify_fn.1} parent=27 // pred_check
        %p180 = pneg %p179
      $region30: #{sparsify_fn.1} parent=27 // pred_check_branch
        %182 = sbr.rel (%p180) target = $region32
      $region31: #{sparsify_fn.1} parent=27 // pred_region
        %183 = vst [vmem:[%s170] sm:$0x3] %v178
      $region32: #{sparsify_fn.1} parent=27 // pred_fallthru
        _
      %p184 = scmp.eq.s32.totalorder %s18, 0
      // Predicated region
      $region33: #{sparsify_fn.1} parent=27 // pred_check
        %p185 = pneg %p184
      $region34: #{sparsify_fn.1} parent=27 // pred_check_branch
        %187 = sbr.rel (%p185) target = $region36
      $region35: #{sparsify_fn.1} parent=27 // pred_region
        %v188 = vlaneseq
        %v189 = vshrl.u32 %v188, 7
        %v190 = vlaneseq
        %v191 = vand.u32 %v190, 127
        %v192 = vmul.u32 %v189, 128
        %v193 = vadd.s32 %v192, %v191
        %vm194 = vcmp.ge.s32.totalorder %v193, 128
        %v195 = vsel %vm194, %v178, %v171
        %196 = vst [vmem:[%s170] sm:$0x3] %v195
      $region36: #{sparsify_fn.1} parent=27 // pred_fallthru
        _
      %p197 = scmp.lt.s32.totalorder %s19, 1
      %s198 = scalar_select %p197, %s19, 1
      %p199 = scmp.lt.s32.totalorder %s18, 0
      %s200 = scalar_select %p199, %s18, 0
      %s201 = sadd.s32 %s200, %s198
      %s202 = smul.addr %s201, 2
      %s203 = scalar_lea.vmem %s2, %s202
      // Predicated region
      $region37: #{sparsify_fn.1} parent=27 // pred_check
        %p204 = pneg %p95
      $region38: #{sparsify_fn.1} parent=27 // pred_check_branch
        %206 = sbr.rel (%p204) target = $region40
      $region39: #{sparsify_fn.1} parent=27 // pred_region
        _
      $region40: #{sparsify_fn.1} parent=27 // pred_fallthru
        _
    $region28: #{sparsify_fn.1} parent=5 // pred_fallthru
      _
    %p207 = scmp.le.s32.totalorder 2, %s9
    // Predicated region
    $region41: #{sparsify_fn.1} parent=5 // pred_check
      %p208 = pneg %p207
    $region42: #{sparsify_fn.1} parent=5 // pred_check_branch
      %210 = sbr.rel (%p208) target = $region44
    $region43: #{sparsify_fn.1} parent=5 // pred_region
      %s211 = ssub.s32 %s9, 2
      // Predicated region
      $region45: #{sparsify_fn.1} parent=43 // pred_check
        %p212 = pneg %p101
      $region46: #{sparsify_fn.1} parent=43 // pred_check_branch
        %214 = sbr.rel (%p212) target = $region48
      $region47: #{sparsify_fn.1} parent=43 // pred_region
        %p215 = scmp.lt.s32.totalorder %s21, 1
        %s216 = scalar_select %p215, %s21, 1
        %p217 = scmp.lt.s32.totalorder %s20, 0
        %s218 = scalar_select %p217, %s20, 0
        %s219 = sadd.s32 %s218, %s216
        %s220 = smul.addr %s219, 2
        %s221 = scalar_lea.vmem %s2, %s220
      $region48: #{sparsify_fn.1} parent=43 // pred_fallthru
        _
    $region44: #{sparsify_fn.1} parent=5 // pred_fallthru
      _
  $region6: #{sparsify_fn.1} parent=0 // loop_footer
    %s13 = sadd.s32 1, %s9
  $region7: #{sparsify_fn.1} parent=0 // loop_footer_branch
    %8 = sbr.rel target = $region3
  $region8: #{sparsify_fn.1} parent=0 // loop_exit
    _

</llo_original>
